<compile_context>
chip_gen: v5e
topology: v5e:2x2
jax: 0.10.0
libtpu: 0.0.40
codegen_flags: <defaults>
</compile_context>

<pallas_src>
import functools

import jax
import jax.numpy as jnp
from jax.experimental import pallas as pl
from jax.experimental.pallas import tpu as pltpu


def _round_up(x: int, m: int) -> int:
    return ((x + m - 1) // m) * m


def _pick_tile_128(dim_pad: int, cap: int) -> int:
    """Largest multiple of 128 (<= cap) that divides dim_pad (dim_pad % 128 == 0)."""
    best = 128
    t = 128
    while t <= min(cap, dim_pad):
        if dim_pad % t == 0:
            best = t
        t += 128
    return best


# --------------------------------------------------------------------------- #
# Kernel: one (tm, tn) output tile, accumulating over the K grid axis.
# --------------------------------------------------------------------------- #
def _fused_linear_kernel(x_ref, w_ref, b_ref, o_ref, acc_ref):
    """
    x_ref:   (tm, tk)  bf16 activations
    w_ref:   (tk, tn)  bf16 pre-transposed fused weights [F, O]
    b_ref:   (1, tn)   f32 fused bias
    o_ref:   (tm, tn)  output tile (out dtype)
    acc_ref: (tm, tn)  f32 VMEM accumulator (persists across K steps)
    """
    k = pl.program_id(2)

    @pl.when(k == 0)
    def _init():
        acc_ref[...] = jnp.zeros_like(acc_ref)

    # y[m, n] += sum_k x[m, k] * w[k, n]   (weight is already [F, O])
    acc_ref[...] += jnp.dot(x_ref[...], w_ref[...],
                            preferred_element_type=jnp.float32)

    @pl.when(k == pl.num_programs(2) - 1)
    def _finalize():
        o_ref[...] = (acc_ref[...] + b_ref[...]).astype(o_ref.dtype)


def _fused_matmul(x_p, w_t, b_p, *, out_dtype, tm, tn, tk):
    """x_p: [B_pad, F_pad], w_t: [F_pad, O_pad], b_p: [1, O_pad] -> [B_pad, O_pad]."""
    B_pad, F_pad = x_p.shape
    O_pad = w_t.shape[1]
    grid = (B_pad // tm, O_pad // tn, F_pad // tk)

    # VMEM budget estimate (double-buffered ins/outs + f32 accumulator).
    x_bytes = tm * tk * x_p.dtype.itemsize
    w_bytes = tk * tn * w_t.dtype.itemsize
    b_bytes = tn * b_p.dtype.itemsize
    o_bytes = tm * tn * jnp.dtype(out_dtype).itemsize
    acc_bytes = tm * tn * 4
    est = 2 * (x_bytes + w_bytes + b_bytes + o_bytes) + acc_bytes
    vmem_limit = min(max(est + (4 << 20), 16 << 20), 48 << 20)

    cost = pl.CostEstimate(
        flops=2 * B_pad * O_pad * F_pad,
        transcendentals=0,
        bytes_accessed=(B_pad * F_pad * x_p.dtype.itemsize
                        + F_pad * O_pad * w_t.dtype.itemsize
                        + O_pad * b_p.dtype.itemsize
                        + B_pad * O_pad * jnp.dtype(out_dtype).itemsize),
    )

    return pl.pallas_call(
        _fused_linear_kernel,
        out_shape=jax.ShapeDtypeStruct((B_pad, O_pad), out_dtype),
        grid_spec=pltpu.PrefetchScalarGridSpec(
            num_scalar_prefetch=0,
            grid=grid,
            in_specs=[
                pl.BlockSpec((tm, tk), lambda i, j, k: (i, k)),   # x
                pl.BlockSpec((tk, tn), lambda i, j, k: (k, j)),   # w [F, O]
                pl.BlockSpec((1, tn), lambda i, j, k: (0, j)),    # bias
            ],
            out_specs=pl.BlockSpec((tm, tn), lambda i, j, k: (i, j)),
            scratch_shapes=[pltpu.VMEM((tm, tn), jnp.float32)],
        ),
        compiler_params=pltpu.CompilerParams(
            dimension_semantics=("parallel", "parallel", "arbitrary"),
            vmem_limit_bytes=vmem_limit),
        cost_estimate=cost,
    )(x_p, w_t, b_p)


def _forward_impl(x, w_t, b_p, *, o_reg, o_reg_pad, o_ext, f_in, tn, tk,
                  compute_dtype):
    """x: [B, F] -> (reg [B, o_reg], ext [B, o_ext] or None)."""
    B, F = x.shape
    assert F == f_in, f"expected {f_in} input features, got {F}"
    F_pad = w_t.shape[0]

    tm = min(512, _round_up(B, 8))
    B_pad = _round_up(B, tm)

    x_c = x.astype(compute_dtype)
    if B_pad != B or F_pad != F:
        x_c = jnp.pad(x_c, ((0, B_pad - B), (0, F_pad - F)))

    out = _fused_matmul(x_c, w_t, b_p, out_dtype=x.dtype, tm=tm, tn=tn, tk=tk)

    if B_pad != B:
        out = out[:B]
    reg = out[:, :o_reg]
    ext = out[:, o_reg_pad:o_reg_pad + o_ext] if o_ext > 0 else None
    return reg, ext


class OutputLayerPallas:
    """Pallas equivalent of OutputLayer(fc=nn.Linear(F, O_reg), num_extra)."""

    def __init__(self, w_reg, b_reg, w_ext=None, b_ext=None, *,
                 compute_dtype=jnp.bfloat16):
        o_reg, f_in = w_reg.shape
        o_ext = 0 if w_ext is None else w_ext.shape[0]
        if o_ext > 0 and w_ext.dtype != w_reg.dtype:
            raise ValueError("w_reg and w_ext must share a dtype")

        # --- one-time weight fusion / padding / transpose / cast ------------
        # Ext head starts at a 128-aligned column so its output slice is
        # lane-aligned; the whole fused output width is padded to 128 lanes.
        o_reg_pad = _round_up(o_reg, 128) if o_ext > 0 else o_reg
        w_blocks = [w_reg]
        b_blocks = [b_reg.astype(jnp.float32)]
        if o_ext > 0:
            if o_reg_pad > o_reg:
                w_blocks.append(jnp.zeros((o_reg_pad - o_reg, f_in), w_reg.dtype))
                b_blocks.append(jnp.zeros((o_reg_pad - o_reg,), jnp.float32))
            w_blocks.append(w_ext)
            b_blocks.append(b_ext.astype(jnp.float32))
        w_fused = jnp.concatenate(w_blocks, axis=0) if len(w_blocks) > 1 else w_reg
        b_fused = jnp.concatenate(b_blocks, axis=0) if len(b_blocks) > 1 else b_blocks[0]

        o_eff = w_fused.shape[0]
        o_pad = _round_up(o_eff, 128)
        f_pad = _round_up(f_in, 128)
        w_fused = jnp.pad(w_fused, ((0, o_pad - o_eff), (0, f_pad - f_in)))
        b_fused = jnp.pad(b_fused, (0, o_pad - o_eff))

        # Stored once: pre-transposed [F_pad, O_pad] bf16 weight, f32 bias.
        self.w_t = jnp.asarray(w_fused.T, dtype=compute_dtype)
        self.b_p = b_fused.reshape(1, o_pad)

        # Lane-dim tiles: largest 128-multiples (<=1024) dividing the padded dims.
        self.tn = _pick_tile_128(o_pad, 1024)
        self.tk = _pick_tile_128(f_pad, 1024)

        self.o_reg, self.o_reg_pad, self.o_ext, self.f_in = o_reg, o_reg_pad, o_ext, f_in

        self._fwd = jax.jit(functools.partial(
            _forward_impl,
            o_reg=o_reg, o_reg_pad=o_reg_pad, o_ext=o_ext, f_in=f_in,
            tn=self.tn, tk=self.tk, compute_dtype=compute_dtype))

    def __call__(self, x):
        reg, ext = self._fwd(x, self.w_t, self.b_p)
        return reg, ext


def init_linear_params(key, in_features, out_features, dtype=jnp.float32):
    """Deterministic nn.Linear-style init: U(-1/sqrt(in), 1/sqrt(in))."""
    kw, kb = jax.random.split(key)
    bound = 1.0 / (in_features ** 0.5)
    w = jax.random.uniform(kw, (out_features, in_features), dtype,
                           minval=-bound, maxval=bound)
    b = jax.random.uniform(kb, (out_features,), dtype,
                           minval=-bound, maxval=bound)
    return w, b


if __name__ == "__main__":
    # Small shapes: fc = nn.Linear(in_features=32, out_features=16), num_extra=4.
    B, F, O_REG, NUM_EXTRA = 8, 32, 16, 4

    key = jax.random.PRNGKey(0)
    kx, kreg, kext = jax.random.split(key, 3)

    x = jax.random.normal(kx, (B, F), jnp.float32)
    w_reg, b_reg = init_linear_params(kreg, F, O_REG)
    w_ext, b_ext = init_linear_params(kext, F, NUM_EXTRA)

    # ---- two-head path ------------------------------------------------------
    layer = OutputLayerPallas(w_reg, b_reg, w_ext, b_ext)
    reg_out, ext_out = layer(x)
    jax.block_until_ready(reg_out)
    jax.block_until_ready(ext_out)

    # bf16-consistent reference (same rounding of streamed operands, f32 math).
    xb = x.astype(jnp.bfloat16).astype(jnp.float32)
    wrb = w_reg.astype(jnp.bfloat16).astype(jnp.float32)
    web = w_ext.astype(jnp.bfloat16).astype(jnp.float32)
    ref_reg_b = xb @ wrb.T + b_reg
    ref_ext_b = xb @ web.T + b_ext
    # full-precision reference (loose tolerance, demonstrates module semantics).
    ref_reg_f = x @ w_reg.T + b_reg
    ref_ext_f = x @ w_ext.T + b_ext

    assert reg_out.shape == (B, O_REG) and ext_out.shape == (B, NUM_EXTRA)
    assert jnp.allclose(reg_out, ref_reg_b, atol=1e-3, rtol=1e-3)
    assert jnp.allclose(ext_out, ref_ext_b, atol=1e-3, rtol=1e-3)
    assert jnp.allclose(reg_out, ref_reg_f, atol=5e-2, rtol=5e-2)
    assert jnp.allclose(ext_out, ref_ext_f, atol=5e-2, rtol=5e-2)

    # ---- num_extra == 0 path -------------------------------------------------
    layer0 = OutputLayerPallas(w_reg, b_reg)
    reg_only, none_out = layer0(x)
    jax.block_until_ready(reg_only)
    assert none_out is None
    assert jnp.allclose(reg_only, ref_reg_b, atol=1e-3, rtol=1e-3)

    print("KERNEL_OK")
</pallas_src>

<mosaic_0001>
module attributes {stable_mosaic.version = 11 : i64} {
  func.func @_fused_linear_kernel(%arg0: i32, %arg1: i32, %arg2: i32, %arg3: memref<8x128xbf16, #tpu.memory_space<vmem>>, %arg4: memref<128x256xbf16, #tpu.memory_space<vmem>>, %arg5: memref<1x256xf32, #tpu.memory_space<vmem>>, %arg6: memref<8x256xf32, #tpu.memory_space<vmem>>, %arg7: memref<8x256xf32, #tpu.memory_space<vmem>>) attributes {dimension_semantics = [#tpu.dimension_semantics<parallel>, #tpu.dimension_semantics<parallel>, #tpu.dimension_semantics<arbitrary>], iteration_bounds = array<i64: 1, 1, 1>, scalar_prefetch = 0 : i64, scratch_operands = 1 : i64, tpu.core_type = #tpu.core_type<tc>, window_params = [{transform_indices = @transform_0, window_bounds = array<i64: 8, 128>}, {transform_indices = @transform_1, window_bounds = array<i64: 128, 256>}, {transform_indices = @transform_2, window_bounds = array<i64: 1, 256>}, {transform_indices = @transform_3, window_bounds = array<i64: 8, 256>}]} {
    %c0_i32 = arith.constant 0 : i32
    %0 = arith.cmpi eq, %arg2, %c0_i32 : i32
    %1 = arith.extui %0 : i1 to i32
    %c0_i32_0 = arith.constant 0 : i32
    %2 = arith.cmpi ne, %1, %c0_i32_0 : i32
    scf.if %2 {
      %cst_10 = arith.constant 0.000000e+00 : f32
      %12 = vector.broadcast %cst_10 : f32 to vector<8x256xf32>
      %c0_11 = arith.constant 0 : index
      %c0_12 = arith.constant 0 : index
      %13 = vector.load %arg7[%c0_11, %c0_12] : memref<8x256xf32, #tpu.memory_space<vmem>>, vector<8x256xf32>
      tpu.vector_store %arg7[%c0_11, %c0_12], %12 {strides = array<i32>} : memref<8x256xf32, #tpu.memory_space<vmem>>, vector<8x256xf32>,
    } else {
    }
    %c0 = arith.constant 0 : index
    %c0_1 = arith.constant 0 : index
    %3 = vector.load %arg7[%c0, %c0_1] : memref<8x256xf32, #tpu.memory_space<vmem>>, vector<8x256xf32>
    %c0_2 = arith.constant 0 : index
    %c0_3 = arith.constant 0 : index
    %4 = vector.load %arg3[%c0_2, %c0_3] : memref<8x128xbf16, #tpu.memory_space<vmem>>, vector<8x128xbf16>
    %c0_4 = arith.constant 0 : index
    %c0_5 = arith.constant 0 : index
    %5 = vector.load %arg4[%c0_4, %c0_5] : memref<128x256xbf16, #tpu.memory_space<vmem>>, vector<128x256xbf16>
    %cst = arith.constant dense<0.000000e+00> : vector<8x256xf32>
    %6 = tpu.matmul %4, %5, %cst {dimension_numbers = #tpu.dot_dimension_numbers<[1], [0], [0], [1], [0, 0, 1, 1], [], []>} : vector<8x128xbf16>, vector<128x256xbf16>, vector<8x256xf32> -> vector<8x256xf32>
    %7 = arith.addf %3, %6 : vector<8x256xf32>
    %c0_6 = arith.constant 0 : index
    %c0_7 = arith.constant 0 : index
    %8 = vector.load %arg7[%c0_6, %c0_7] : memref<8x256xf32, #tpu.memory_space<vmem>>, vector<8x256xf32>
    tpu.vector_store %arg7[%c0_6, %c0_7], %7 {strides = array<i32>} : memref<8x256xf32, #tpu.memory_space<vmem>>, vector<8x256xf32>,
    %c0_i32_8 = arith.constant 0 : i32
    %9 = arith.cmpi eq, %arg2, %c0_i32_8 : i32
    %10 = arith.extui %9 : i1 to i32
    %c0_i32_9 = arith.constant 0 : i32
    %11 = arith.cmpi ne, %10, %c0_i32_9 : i32
    scf.if %11 {
      %c0_10 = arith.constant 0 : index
      %c0_11 = arith.constant 0 : index
      %12 = vector.load %arg7[%c0_10, %c0_11] : memref<8x256xf32, #tpu.memory_space<vmem>>, vector<8x256xf32>
      %c0_12 = arith.constant 0 : index
      %c0_13 = arith.constant 0 : index
      %13 = vector.load %arg5[%c0_12, %c0_13] : memref<1x256xf32, #tpu.memory_space<vmem>>, vector<1x256xf32>
      %14 = vector.broadcast %13 : vector<1x256xf32> to vector<8x256xf32>
      %15 = arith.addf %12, %14 : vector<8x256xf32>
      %c0_14 = arith.constant 0 : index
      %c0_15 = arith.constant 0 : index
      %16 = vector.load %arg6[%c0_14, %c0_15] : memref<8x256xf32, #tpu.memory_space<vmem>>, vector<8x256xf32>
      tpu.vector_store %arg6[%c0_14, %c0_15], %15 {strides = array<i32>} : memref<8x256xf32, #tpu.memory_space<vmem>>, vector<8x256xf32>,
    } else {
    }
    return
  }
  func.func @transform_0(%arg0: i32, %arg1: i32, %arg2: i32) -> (i32, i32) {
    %c0_i32 = arith.constant 0 : i32
    return %arg0, %arg2 : i32, i32
  }
  func.func @transform_1(%arg0: i32, %arg1: i32, %arg2: i32) -> (i32, i32) {
    %c0_i32 = arith.constant 0 : i32
    return %arg2, %arg1 : i32, i32
  }
  func.func @transform_2(%arg0: i32, %arg1: i32, %arg2: i32) -> (i32, i32) {
    %c0_i32 = arith.constant 0 : i32
    %c0_i32_0 = arith.constant 0 : i32
    return %c0_i32, %arg1 : i32, i32
  }
  func.func @transform_3(%arg0: i32, %arg1: i32, %arg2: i32) -> (i32, i32) {
    %c0_i32 = arith.constant 0 : i32
    return %arg0, %arg1 : i32, i32
  }
}

</mosaic_0001>

<llo_original>
// kernel: _forward_impl.1
$region0: #{_forward_impl.1}
  #allocation0 [shape = 'u32[]', space=smem, size = 0x4, offset = 0x4, fixed_abs, tag = 'smem constant byte address 0x4 - core index']
  #allocation1 [shape = 'u32[72,128]{1,0:T(1,128)}', space=vmem, size = 0x9000, scoped, tag = 'internal scratch']
  #allocation2 [shape = 'f32[8,256]{1,0:T(8,128)}', space=vmem, size = 0x2000, scoped, tag = 'scratch operand']
  %s0 = inlined_call_operand.vmem [shape: bf16[8,128], index: 0, kind: input, shape index: {}]
  %s1 = inlined_call_operand.hbm [shape: bf16[128,256], index: 1, kind: input, shape index: {}]
  %s2 = inlined_call_operand.vmem [shape: f32[1,256], index: 2, kind: input, shape index: {}]
  %s3 = inlined_call_operand.vmem [shape: f32[8,256], index: 3, kind: output, shape index: {}]
  %s4 = sld [smem:[#allocation0]]
  $region34: #{_forward_impl.1} parent=0
    _
  %s6 = ssub.s32 1, %s4
  %s7 = scalar_select 0, %s6, %s4
  $region1: #{_forward_impl.1} parent=0
    #allocation3 [shape = 'u8[65536]{0}', space=vmem, size = 0x10000, scoped, tag = 'input window, operand 1, single buffered']
    #allocation4 [shape = 's32[1]{0}', space=sflag, size = 0x4, scoped, tag = 'scoped memory for _forward_impl.1']
    %8 = vsyncpa [#allocation4], 0
    // Predicated region
    $region2: #{_forward_impl.1} parent=1 // pred_check
      _
    $region3: #{_forward_impl.1} parent=1 // pred_check_branch
      %10 = sbr.rel (0) target = $region5
    $region4: #{_forward_impl.1} parent=1 // pred_region
      _
    $region5: #{_forward_impl.1} parent=1 // pred_fallthru
      _
    // Predicated region
    $region6: #{_forward_impl.1} parent=1 // pred_check
      _
    $region7: #{_forward_impl.1} parent=1 // pred_check_branch
      %12 = sbr.rel (0) target = $region9
    $region8: #{_forward_impl.1} parent=1 // pred_region
      %14 = vsyncadd [#allocation4], 0
      %s15 = sshll.u32 %s1, 4
      %s16 = int_to_ptr.hbm [resolvable:$true] %s15
      %s17 = sshll.u32 [#allocation3], 4
      %s18 = int_to_ptr.vmem [resolvable:$true] %s17
      %23 = dma.hbm_to_vmem [thread:$0]  %s16, 2048, %s18, [#allocation4], 128, 128, 8
    $region9: #{_forward_impl.1} parent=1 // pred_fallthru
      _
    // Predicated region
    $region10: #{_forward_impl.1} parent=1 // pred_check
      _
    $region11: #{_forward_impl.1} parent=1 // pred_check_branch
      %25 = sbr.rel (0) target = $region13
    $region12: #{_forward_impl.1} parent=1 // pred_region
      _
    $region13: #{_forward_impl.1} parent=1 // pred_fallthru
      _
    // Predicated region
    $region14: #{_forward_impl.1} parent=1 // pred_check
      _
    $region15: #{_forward_impl.1} parent=1 // pred_check_branch
      %27 = sbr.rel (0) target = $region17
    $region16: #{_forward_impl.1} parent=1 // pred_region
      %29 = dma.done [#allocation4], 2048
    $region17: #{_forward_impl.1} parent=1 // pred_fallthru
      _
    %p30 = scmp.eq.s32.totalorder 0, 0
    // Predicated region
    $region18: #{_forward_impl.1} parent=1 // pred_check
      %p31 = pneg %p30
    $region19: #{_forward_impl.1} parent=1 // pred_check_branch
      %33 = sbr.rel (%p31) target = $region21
    $region20: #{_forward_impl.1} parent=1 // pred_region
      %34 = vst [vmem:[#allocation2] sm:$0xff] 0.0
      %35 = vst [vmem:[#allocation2 + $0x8] sm:$0xff] 0.0
    $region21: #{_forward_impl.1} parent=1 // pred_fallthru
      _
    %v36 = vld [vmem:[#allocation2] sm:$0xff]
    %v37 = vld [vmem:[#allocation2 + $0x8] sm:$0xff]
    %v38 = vld [vmem:[%s0] sm:$0xf]
    %v39 = vld [vmem:[#allocation3] sm:$0xff]
    %v40 = vld [vmem:[#allocation3 + $0x8] sm:$0xff]
    %v41 = vld [vmem:[#allocation3 + $0x10] sm:$0xff]
    %v42 = vld [vmem:[#allocation3 + $0x18] sm:$0xff]
    %v43 = vld [vmem:[#allocation3 + $0x20] sm:$0xff]
    %v44 = vld [vmem:[#allocation3 + $0x28] sm:$0xff]
    %v45 = vld [vmem:[#allocation3 + $0x30] sm:$0xff]
    %v46 = vld [vmem:[#allocation3 + $0x38] sm:$0xff]
    %v47 = vld [vmem:[#allocation3 + $0x40] sm:$0xff]
    %v48 = vld [vmem:[#allocation3 + $0x48] sm:$0xff]
    %v49 = vld [vmem:[#allocation3 + $0x50] sm:$0xff]
    %v50 = vld [vmem:[#allocation3 + $0x58] sm:$0xff]
    %v51 = vld [vmem:[#allocation3 + $0x60] sm:$0xff]
    %v52 = vld [vmem:[#allocation3 + $0x68] sm:$0xff]
    %v53 = vld [vmem:[#allocation3 + $0x70] sm:$0xff]
    %v54 = vld [vmem:[#allocation3 + $0x78] sm:$0xff]
    %v71 = vunpack.c.l.b16 %v39
    %v72 = vunpack.c.h.b16 %v39
    %v73 = vunpack.c.l.b16 %v40
    %v74 = vunpack.c.h.b16 %v40
    %v75 = vunpack.c.l.b16 %v41
    %v76 = vunpack.c.h.b16 %v41
    %v77 = vunpack.c.l.b16 %v42
    %v78 = vunpack.c.h.b16 %v42
    %v79 = vunpack.c.l.b16 %v43
    %v80 = vunpack.c.h.b16 %v43
    %v81 = vunpack.c.l.b16 %v44
    %v82 = vunpack.c.h.b16 %v44
    %v83 = vunpack.c.l.b16 %v45
    %v84 = vunpack.c.h.b16 %v45
    %v85 = vunpack.c.l.b16 %v46
    %v86 = vunpack.c.h.b16 %v46
    %v87 = vunpack.c.l.b16 %v47
    %v88 = vunpack.c.h.b16 %v47
    %v89 = vunpack.c.l.b16 %v48
    %v90 = vunpack.c.h.b16 %v48
    %v91 = vunpack.c.l.b16 %v49
    %v92 = vunpack.c.h.b16 %v49
    %v93 = vunpack.c.l.b16 %v50
    %v94 = vunpack.c.h.b16 %v50
    %v95 = vunpack.c.l.b16 %v51
    %v96 = vunpack.c.h.b16 %v51
    %v97 = vunpack.c.l.b16 %v52
    %v98 = vunpack.c.h.b16 %v52
    %v99 = vunpack.c.l.b16 %v53
    %v100 = vunpack.c.h.b16 %v53
    %v101 = vunpack.c.l.b16 %v54
    %v102 = vunpack.c.h.b16 %v54
    %v103 = vpack.c.b16 %v73, %v71
    %v104 = vpack.c.b16 %v74, %v72
    %v105 = vpack.c.b16 %v77, %v75
    %v106 = vpack.c.b16 %v78, %v76
    %v107 = vpack.c.b16 %v81, %v79
    %v108 = vpack.c.b16 %v82, %v80
    %v109 = vpack.c.b16 %v85, %v83
    %v110 = vpack.c.b16 %v86, %v84
    %v111 = vpack.c.b16 %v89, %v87
    %v112 = vpack.c.b16 %v90, %v88
    %v113 = vpack.c.b16 %v93, %v91
    %v114 = vpack.c.b16 %v94, %v92
    %v115 = vpack.c.b16 %v97, %v95
    %v116 = vpack.c.b16 %v98, %v96
    %v117 = vpack.c.b16 %v101, %v99
    %v118 = vpack.c.b16 %v102, %v100
    %135 = vmatpush.bf16.msra.mxu0 %v117
    %136 = vmatpush.bf16.msra.mxu0 %v115
    %137 = vmatpush.bf16.msra.mxu0 %v113
    %138 = vmatpush.bf16.msra.mxu0 %v111
    %139 = vmatpush.bf16.msra.mxu0 %v109
    %140 = vmatpush.bf16.msra.mxu0 %v107
    %141 = vmatpush.bf16.msra.mxu0 %v105
    %142 = vmatpush.bf16.msra.mxu0 %v103
    %143 = vmatmul.bf16.gmra.mxu0 %v38
    %v144 = vpop.f32.mrf.mxu0
    %v145 = vadd.f32 0.0, %v144
    %v146 = vpop.f32.mrf.mxu0
    %147 = vdwg.mxu0
    %148 = vmatpush.bf16.msra.mxu0 %v118
    %149 = vmatpush.bf16.msra.mxu0 %v116
    %150 = vmatpush.bf16.msra.mxu0 %v114
    %151 = vmatpush.bf16.msra.mxu0 %v112
    %152 = vmatpush.bf16.msra.mxu0 %v110
    %153 = vmatpush.bf16.msra.mxu0 %v108
    %154 = vmatpush.bf16.msra.mxu0 %v106
    %155 = vmatpush.bf16.msra.mxu0 %v104
    %156 = vmatmul.bf16.gmra.mxu0 %v38
    %v157 = vpop.f32.mrf.mxu0
    %v158 = vadd.f32 0.0, %v157
    %v159 = vpop.f32.mrf.mxu0
    %160 = vdwg.mxu0
    %v161 = vadd.f32 %v36, %v145
    %v162 = vadd.f32 %v37, %v158
    %163 = vst [vmem:[#allocation2] sm:$0xff] %v161
    %164 = vst [vmem:[#allocation2 + $0x8] sm:$0xff] %v162
    // Predicated region
    $region22: #{_forward_impl.1} parent=1 // pred_check
      %p165 = pneg %p30
    $region23: #{_forward_impl.1} parent=1 // pred_check_branch
      %167 = sbr.rel (%p165) target = $region25
    $region24: #{_forward_impl.1} parent=1 // pred_region
      %v168 = vld [vmem:[#allocation2] sm:$0xff]
      %v169 = vld [vmem:[#allocation2 + $0x8] sm:$0xff]
      %v170 = vld [vmem:[%s2] sm:$0x3]
      %v172 = vperm.slane %v170, 0
      %v173 = vperm.slane %v170, 1
      %v176 = vadd.f32 %v168, %v172
      %v177 = vadd.f32 %v169, %v173
      %178 = vst [vmem:[%s3] sm:$0xff] %v176
      %179 = vst [vmem:[%s3 + $0x8] sm:$0xff] %v177
    $region25: #{_forward_impl.1} parent=1 // pred_fallthru
      _
    // Predicated region
    $region26: #{_forward_impl.1} parent=1 // pred_check
      _
    $region27: #{_forward_impl.1} parent=1 // pred_check_branch
      %181 = sbr.rel (0) target = $region29
    $region28: #{_forward_impl.1} parent=1 // pred_region
      _
    $region29: #{_forward_impl.1} parent=1 // pred_fallthru
      _
    // Predicated region
    $region30: #{_forward_impl.1} parent=1 // pred_check
      _
    $region31: #{_forward_impl.1} parent=1 // pred_check_branch
      %183 = sbr.rel (0) target = $region33
    $region32: #{_forward_impl.1} parent=1 // pred_region
      _
    $region33: #{_forward_impl.1} parent=1 // pred_fallthru
      _
    %184 = vsyncpa [#allocation4], 1

</llo_original>
